<compile_context>
chip_gen: v7x
topology: tpu7x:2x2x1
jax: 0.10.0
libtpu: 0.0.40
codegen_flags: <defaults>
</compile_context>

<pallas_src>
import jax
import jax.numpy as jnp
from jax.experimental import pallas as pl
from jax.experimental.pallas import tpu as pltpu


_H1, _H2 = 100, 500          # Critic hidden sizes (fixed by the module)
_BATCH_TILE = 256            # row block for the batched (gridded) path


def _round_up(x, m):
    return ((x + m - 1) // m) * m


def _pad2(a, r, c):
    return jnp.pad(a, ((0, r - a.shape[0]), (0, c - a.shape[1])))


def critic_kernel(x_ref, w1_ref, b1_ref, w2_ref, b2_ref, w3_ref, b3_ref, o_ref):
    # layer 1: Linear(S -> 100) + ReLU. x arrives f32, cast to bf16 in VMEM;
    # the small K=S contraction is padded internally by Mosaic.
    x = x_ref[...].astype(jnp.bfloat16)
    h1 = jnp.dot(x, w1_ref[...], preferred_element_type=jnp.float32)
    h1 = jnp.maximum(h1 + b1_ref[...], 0.0)
    # layer 2: Linear(100 -> 500) + ReLU (bf16 operands, f32 accumulation).
    h2 = jnp.dot(h1.astype(jnp.bfloat16), w2_ref[...],
                 preferred_element_type=jnp.float32)
    h2 = jnp.maximum(h2 + b2_ref[...], 0.0)
    # layer 3: value head Linear(500 -> 1). OUT=1 -> skip the MXU entirely:
    # elementwise multiply by the f32 weight row and reduce over lanes (XLU).
    o = jnp.sum(h2 * w3_ref[...], axis=-1, keepdims=True)
    o_ref[...] = o + b3_ref[...]


def prepare_params(params):
    """One-time padding + dtype cast of the Critic parameters.

    Hidden dims are zero-padded to lane-friendly sizes and the matmul weights
    are cast to bf16; the layer-1 contraction dim (state_space) is NOT padded;
    the value-head weight is a single f32 row; biases stay f32. Call once and
    reuse for every forward pass.
    """
    w1, b1 = params["w1"], params["b1"]
    w2, b2 = params["w2"], params["b2"]
    w3, b3 = params["w3"], params["b3"]

    S, H1 = w1.shape
    H2 = w2.shape[1]
    H1p, H2p = _round_up(H1, 128), _round_up(H2, 128)

    return {
        "w1": _pad2(w1, S, H1p).astype(jnp.bfloat16),     # (S, H1p)   bf16
        "b1": _pad2(b1.reshape(1, -1), 1, H1p),           # (1, H1p)   f32
        "w2": _pad2(w2, H1p, H2p).astype(jnp.bfloat16),   # (H1p, H2p) bf16
        "b2": _pad2(b2.reshape(1, -1), 1, H2p),           # (1, H2p)   f32
        "w3": _pad2(w3.T, 1, H2p).astype(jnp.float32),    # (1, H2p)   f32 row
        "b3": b3.reshape(1, 1).astype(jnp.float32),       # (1, 1)     f32
    }


@jax.jit
def critic_forward(state, prepared):
    """state: (B, S) float32. Returns (B, 1) float32 value estimates."""
    B, S = state.shape
    H1p = prepared["w2"].shape[0]
    H2p = prepared["w2"].shape[1]

    weight_args = (prepared["w1"], prepared["b1"], prepared["w2"],
                   prepared["b2"], prepared["w3"], prepared["b3"])

    def whole(shape):
        # whole (padded) array as a single VMEM-resident block (any grid)
        return pl.BlockSpec(shape, lambda *args: (0,) * len(shape))

    weight_specs = [whole((S, H1p)), whole((1, H1p)),
                    whole((H1p, H2p)), whole((1, H2p)),
                    whole((1, H2p)), whole((1, 1))]

    bytes_accessed = (S * H1p * 2 + H1p * 4 + H1p * H2p * 2 + H2p * 4
                      + H2p * 4 + 4 + B * S * 4 + B * 4)
    cost = pl.CostEstimate(flops=2 * B * (S * _H1 + _H1 * _H2 + _H2),
                           transcendentals=0, bytes_accessed=bytes_accessed)

    if B < _BATCH_TILE:
        # Small-batch / latency path: single block, no surrounding pad/cast or
        # output slice HLOs — the kernel consumes raw f32 state and emits (B,1).
        return pl.pallas_call(
            critic_kernel,
            out_shape=jax.ShapeDtypeStruct((B, 1), jnp.float32),
            grid=(),
            in_specs=[whole((B, S))] + weight_specs,
            out_specs=whole((B, 1)),
            cost_estimate=cost,
        )(state, *weight_args)

    # Throughput path: tile the batch, keep weights VMEM-resident across grid
    # steps, and mark the batch axis "parallel" (shards across v7x's 2 TCs).
    Bp = _round_up(B, _BATCH_TILE)
    x = state if Bp == B else jnp.pad(state, ((0, Bp - B), (0, 0)))
    out = pl.pallas_call(
        critic_kernel,
        out_shape=jax.ShapeDtypeStruct((Bp, 1), jnp.float32),
        grid=(Bp // _BATCH_TILE,),
        in_specs=[pl.BlockSpec((_BATCH_TILE, S), lambda i: (i, 0))] + weight_specs,
        out_specs=pl.BlockSpec((_BATCH_TILE, 1), lambda i: (i, 0)),
        # TODO(synk): a lane-dense (1, TB) output layout would avoid vst.msk
        # partial stores on the batched path; kept as a (TB, 1) column.
        compiler_params=pltpu.CompilerParams(dimension_semantics=("parallel",)),
        cost_estimate=cost,
    )(x, *weight_args)
    return out[:B, :]


def init_params(key, state_space):
    """Deterministic synthetic init: Linear(state_space,100)->(100,500)->(500,1)."""
    ks = jax.random.split(key, 6)

    def lin(kw, kb, fan_in, fan_out):
        bound = 1.0 / jnp.sqrt(fan_in)
        w = jax.random.uniform(kw, (fan_in, fan_out), jnp.float32, -bound, bound)
        b = jax.random.uniform(kb, (fan_out,), jnp.float32, -bound, bound)
        return w, b

    w1, b1 = lin(ks[0], ks[1], state_space, 100)
    w2, b2 = lin(ks[2], ks[3], 100, 500)
    w3, b3 = lin(ks[4], ks[5], 500, 1)
    return {"w1": w1, "b1": b1, "w2": w2, "b2": b2, "w3": w3, "b3": b3}


if __name__ == "__main__":
    key = jax.random.PRNGKey(0)
    k_state, k_big, k_params = jax.random.split(key, 3)

    state_space = 8
    params = init_params(k_params, state_space)
    prepared = prepare_params(params)          # pad + cast once, reuse per step

    # Pure-JAX reference matching the kernel's numerics (bf16 operands, f32 acc).
    def ref_bf16(x, p):
        xb = x.astype(jnp.bfloat16)
        h = jnp.dot(xb, p["w1"].astype(jnp.bfloat16),
                    preferred_element_type=jnp.float32) + p["b1"]
        h = jnp.maximum(h, 0.0)
        h = jnp.dot(h.astype(jnp.bfloat16), p["w2"].astype(jnp.bfloat16),
                    preferred_element_type=jnp.float32) + p["b2"]
        h = jnp.maximum(h, 0.0)
        return h @ p["w3"] + p["b3"]

    # 1) small-batch / latency path (grid=(), no surrounding pad/slice HLOs).
    state = jax.random.normal(k_state, (4, state_space), jnp.float32)
    value = jax.block_until_ready(critic_forward(state, prepared))
    assert value.shape == (4, 1)
    assert jnp.allclose(value, ref_bf16(state, params), atol=1e-2, rtol=1e-2)

    # 2) batched / throughput path (parallel batch grid; 300 -> 2 blocks of 256).
    big_state = jax.random.normal(k_big, (300, state_space), jnp.float32)
    big_value = jax.block_until_ready(critic_forward(big_state, prepared))
    assert big_value.shape == (300, 1)
    assert jnp.allclose(big_value, ref_bf16(big_state, params), atol=1e-2, rtol=1e-2)

    print("KERNEL_OK")
</pallas_src>

<mosaic_0001>
module attributes {stable_mosaic.version = 11 : i64} {
  func.func @critic_kernel(%arg0: memref<4x8xf32, #tpu.memory_space<vmem>>, %arg1: memref<8x128xbf16, #tpu.memory_space<vmem>>, %arg2: memref<1x128xf32, #tpu.memory_space<vmem>>, %arg3: memref<128x512xbf16, #tpu.memory_space<vmem>>, %arg4: memref<1x512xf32, #tpu.memory_space<vmem>>, %arg5: memref<1x512xf32, #tpu.memory_space<vmem>>, %arg6: memref<1x1xf32, #tpu.memory_space<vmem>>, %arg7: memref<4x1xf32, #tpu.memory_space<vmem>>) attributes {dimension_semantics = [], scalar_prefetch = 0 : i64, scratch_operands = 0 : i64, tpu.core_type = #tpu.core_type<tc>} {
    %c0 = arith.constant 0 : index
    %c0_0 = arith.constant 0 : index
    %0 = vector.load %arg0[%c0, %c0_0] : memref<4x8xf32, #tpu.memory_space<vmem>>, vector<4x8xf32>
    %1 = arith.truncf %0 : vector<4x8xf32> to vector<4x8xbf16>
    %c0_1 = arith.constant 0 : index
    %c0_2 = arith.constant 0 : index
    %2 = vector.load %arg1[%c0_1, %c0_2] : memref<8x128xbf16, #tpu.memory_space<vmem>>, vector<8x128xbf16>
    %cst = arith.constant dense<0.000000e+00> : vector<4x128xf32>
    %3 = tpu.matmul %1, %2, %cst {dimension_numbers = #tpu.dot_dimension_numbers<[1], [0], [0], [1], [0, 0, 1, 1], [], []>} : vector<4x8xbf16>, vector<8x128xbf16>, vector<4x128xf32> -> vector<4x128xf32>
    %c0_3 = arith.constant 0 : index
    %c0_4 = arith.constant 0 : index
    %4 = vector.load %arg2[%c0_3, %c0_4] : memref<1x128xf32, #tpu.memory_space<vmem>>, vector<1x128xf32>
    %5 = vector.broadcast %4 : vector<1x128xf32> to vector<4x128xf32>
    %6 = arith.addf %3, %5 : vector<4x128xf32>
    %cst_5 = arith.constant 0.000000e+00 : f32
    %7 = vector.broadcast %cst_5 : f32 to vector<4x128xf32>
    %8 = arith.maximumf %6, %7 : vector<4x128xf32>
    %9 = arith.truncf %8 : vector<4x128xf32> to vector<4x128xbf16>
    %c0_6 = arith.constant 0 : index
    %c0_7 = arith.constant 0 : index
    %10 = vector.load %arg3[%c0_6, %c0_7] : memref<128x512xbf16, #tpu.memory_space<vmem>>, vector<128x512xbf16>
    %cst_8 = arith.constant dense<0.000000e+00> : vector<4x512xf32>
    %11 = tpu.matmul %9, %10, %cst_8 {dimension_numbers = #tpu.dot_dimension_numbers<[1], [0], [0], [1], [0, 0, 1, 1], [], []>} : vector<4x128xbf16>, vector<128x512xbf16>, vector<4x512xf32> -> vector<4x512xf32>
    %c0_9 = arith.constant 0 : index
    %c0_10 = arith.constant 0 : index
    %12 = vector.load %arg4[%c0_9, %c0_10] : memref<1x512xf32, #tpu.memory_space<vmem>>, vector<1x512xf32>
    %13 = vector.broadcast %12 : vector<1x512xf32> to vector<4x512xf32>
    %14 = arith.addf %11, %13 : vector<4x512xf32>
    %cst_11 = arith.constant 0.000000e+00 : f32
    %15 = vector.broadcast %cst_11 : f32 to vector<4x512xf32>
    %16 = arith.maximumf %14, %15 : vector<4x512xf32>
    %c0_12 = arith.constant 0 : index
    %c0_13 = arith.constant 0 : index
    %17 = vector.load %arg5[%c0_12, %c0_13] : memref<1x512xf32, #tpu.memory_space<vmem>>, vector<1x512xf32>
    %18 = vector.broadcast %17 : vector<1x512xf32> to vector<4x512xf32>
    %19 = arith.mulf %16, %18 : vector<4x512xf32>
    %cst_14 = arith.constant dense<0.000000e+00> : vector<4xf32>
    %20 = vector.multi_reduction <add>, %19, %cst_14 [1] : vector<4x512xf32> to vector<4xf32>
    %21 = vector.shape_cast %20 : vector<4xf32> to vector<4x1xf32>
    %c0_15 = arith.constant 0 : index
    %c0_16 = arith.constant 0 : index
    %22 = vector.load %arg6[%c0_15, %c0_16] : memref<1x1xf32, #tpu.memory_space<vmem>>, vector<1x1xf32>
    %23 = vector.broadcast %22 : vector<1x1xf32> to vector<4x1xf32>
    %24 = arith.addf %21, %23 : vector<4x1xf32>
    %c0_17 = arith.constant 0 : index
    %c0_18 = arith.constant 0 : index
    %25 = vector.load %arg7[%c0_17, %c0_18] : memref<4x1xf32, #tpu.memory_space<vmem>>, vector<4x1xf32>
    tpu.vector_store %arg7[%c0_17, %c0_18], %24 {strides = array<i32>} : memref<4x1xf32, #tpu.memory_space<vmem>>, vector<4x1xf32>,
    return
  }
}

</mosaic_0001>

<llo_original>
// kernel: critic_forward.1
$region0: #{critic_forward.1}
  #allocation0 [shape = 'u32[]', space=smem, size = 0x4, offset = 0x4, fixed_abs, tag = 'smem constant byte address 0x4 - core index']
  #allocation1 [shape = 'u32[144,128]{1,0:T(1,128)}', space=vmem, size = 0x12000, scoped, tag = 'internal scratch']
  #allocation2 [shape = 'f32[1,1]{1,0:T(1,128)S(1)}', space=vmem, size = 0x200, scoped, tag = 'scoped memory for critic_forward.1']
  %s0 = inlined_call_operand.hbm [shape: f32[4,8], index: 0, kind: input, shape index: {}]
  %s1 = inlined_call_operand.vmem [shape: bf16[8,128], index: 1, kind: input, shape index: {}]
  %s2 = inlined_call_operand.vmem [shape: f32[1,128], index: 2, kind: input, shape index: {}]
  %s3 = inlined_call_operand.hbm [shape: bf16[128,512], index: 3, kind: input, shape index: {}]
  %s4 = inlined_call_operand.vmem [shape: f32[1,512], index: 4, kind: input, shape index: {}]
  %s5 = inlined_call_operand.vmem [shape: f32[1,512], index: 5, kind: input, shape index: {}]
  %s6 = inlined_call_operand.<no memory space> [shape: f32[1,1], index: 6, kind: input, shape index: {}]
  %s7 = inlined_call_operand.vmem [shape: f32[4,1], index: 7, kind: output, shape index: {}]
  %s8 = sld [smem:[#allocation0]]
  $region46: #{critic_forward.1} parent=0
    _
  %s10 = ssub.s32 1, %s8
  %s11 = scalar_select 0, %s10, %s8
  %v12 = vstv %s6
  %13 = vst [vmem:[#allocation2] sm:$0x1] %v12
  $region1: #{critic_forward.1} parent=0
    #allocation3 [shape = 'u8[2048]{0}', space=vmem, size = 0x800, scoped, tag = 'input window, operand 0, single buffered']
    #allocation4 [shape = 's32[1]{0}', space=sflag, size = 0x4, scoped, tag = 'scoped memory for critic_forward.1']
    #allocation5 [shape = 'u8[131072]{0}', space=vmem, size = 0x20000, scoped, tag = 'input window, operand 3, single buffered']
    #allocation6 [shape = 's32[1]{0}', space=sflag, size = 0x4, scoped, tag = 'scoped memory for critic_forward.1']
    %14 = vsyncpa [#allocation4], 0
    %15 = vsyncpa [#allocation6], 0
    // Predicated region
    $region2: #{critic_forward.1} parent=1 // pred_check
      _
    $region3: #{critic_forward.1} parent=1 // pred_check_branch
      %17 = sbr.rel (0) target = $region5
    $region4: #{critic_forward.1} parent=1 // pred_region
      %s19 = ssub.s32 64, 64
      %20 = vsyncadd [#allocation4], %s19
      %s22 = sshll.u32 [#allocation3], 4
      %s23 = int_to_ptr.vmem [resolvable:$true] %s22
      %25 = dma.hbm_to_vmem [thread:$0]  %s0, 64, %s23, [#allocation4]
    $region5: #{critic_forward.1} parent=1 // pred_fallthru
      _
    // Predicated region
    $region6: #{critic_forward.1} parent=1 // pred_check
      _
    $region7: #{critic_forward.1} parent=1 // pred_check_branch
      %27 = sbr.rel (0) target = $region9
    $region8: #{critic_forward.1} parent=1 // pred_region
      _
    $region9: #{critic_forward.1} parent=1 // pred_fallthru
      _
    // Predicated region
    $region10: #{critic_forward.1} parent=1 // pred_check
      _
    $region11: #{critic_forward.1} parent=1 // pred_check_branch
      %29 = sbr.rel (0) target = $region13
    $region12: #{critic_forward.1} parent=1 // pred_region
      _
    $region13: #{critic_forward.1} parent=1 // pred_fallthru
      _
    // Predicated region
    $region14: #{critic_forward.1} parent=1 // pred_check
      _
    $region15: #{critic_forward.1} parent=1 // pred_check_branch
      %31 = sbr.rel (0) target = $region17
    $region16: #{critic_forward.1} parent=1 // pred_region
      %s33 = ssub.s32 4096, 4096
      %34 = vsyncadd [#allocation6], %s33
      %s35 = sshll.u32 [#allocation5], 4
      %s36 = int_to_ptr.vmem [resolvable:$true] %s35
      %41 = dma.hbm_to_vmem [thread:$0]  %s3, 4096, %s36, [#allocation6], 256, 256, 16
    $region17: #{critic_forward.1} parent=1 // pred_fallthru
      _
    // Predicated region
    $region18: #{critic_forward.1} parent=1 // pred_check
      _
    $region19: #{critic_forward.1} parent=1 // pred_check_branch
      %43 = sbr.rel (0) target = $region21
    $region20: #{critic_forward.1} parent=1 // pred_region
      _
    $region21: #{critic_forward.1} parent=1 // pred_fallthru
      _
    // Predicated region
    $region22: #{critic_forward.1} parent=1 // pred_check
      _
    $region23: #{critic_forward.1} parent=1 // pred_check_branch
      %45 = sbr.rel (0) target = $region25
    $region24: #{critic_forward.1} parent=1 // pred_region
      _
    $region25: #{critic_forward.1} parent=1 // pred_fallthru
      _
    // Predicated region
    $region26: #{critic_forward.1} parent=1 // pred_check
      _
    $region27: #{critic_forward.1} parent=1 // pred_check_branch
      %47 = sbr.rel (0) target = $region29
    $region28: #{critic_forward.1} parent=1 // pred_region
      _
    $region29: #{critic_forward.1} parent=1 // pred_fallthru
      _
    // Predicated region
    $region30: #{critic_forward.1} parent=1 // pred_check
      _
    $region31: #{critic_forward.1} parent=1 // pred_check_branch
      %49 = sbr.rel (0) target = $region33
    $region32: #{critic_forward.1} parent=1 // pred_region
      %50 = dma.done [#allocation4], 64
    $region33: #{critic_forward.1} parent=1 // pred_fallthru
      _
    // Predicated region
    $region34: #{critic_forward.1} parent=1 // pred_check
      _
    $region35: #{critic_forward.1} parent=1 // pred_check_branch
      %52 = sbr.rel (0) target = $region37
    $region36: #{critic_forward.1} parent=1 // pred_region
      %53 = dma.done [#allocation6], 4096
    $region37: #{critic_forward.1} parent=1 // pred_fallthru
      _
    %v55 = vld [vmem:[#allocation3] sm:$0xf]
    %v56 = vpack.c.bf16 %v55, %v55
    %v57 = vld [vmem:[%s1] sm:$0xf]
    %v58 = vld [vmem:[%s2] sm:$0x1]
    %v60 = vlaneseq
    %v61 = vshrl.u32 %v60, 7
    %v62 = vsub.s32 0, %v61
    %v63 = vrot.slane %v58, %v62
    %vm65 = vcmask 64512
    %v67 = vsel %vm65, %v56, 0
    %vm69 = vcmask 1043456
    %v71 = vsel %vm69, %v57, 0
    %73 = vmatprep.subr.bf16.mxu0 0
    %74 = vmatpush1.bf16.msra.mxu0 %v71
    %75 = vmatprep.subr.bf16.mxu0 0
    %76 = vmatpush1.bf16.msra.mxu0 0
    %77 = vmatprep.subr.bf16.mxu0 0
    %78 = vmatpush1.bf16.msra.mxu0 0
    %79 = vmatprep.subr.bf16.mxu0 0
    %80 = vmatpush1.bf16.msra.mxu0 0
    %81 = vmatprep.subr.bf16.mxu0 0
    %82 = vmatpush1.bf16.msra.mxu0 0
    %83 = vmatprep.subr.bf16.mxu0 0
    %84 = vmatpush1.bf16.msra.mxu0 0
    %85 = vmatprep.subr.bf16.mxu0 0
    %86 = vmatpush1.bf16.msra.mxu0 0
    %87 = vmatprep.subr.bf16.mxu0 0
    %88 = vmatpush1.bf16.msra.mxu0 0
    %89 = vmatprep.subr.bf16.mxu0 0
    %90 = vmatpush1.bf16.msra.mxu0 0
    %91 = vmatprep.subr.bf16.mxu0 0
    %92 = vmatpush1.bf16.msra.mxu0 0
    %93 = vmatprep.subr.bf16.mxu0 0
    %94 = vmatpush1.bf16.msra.mxu0 0
    %95 = vmatprep.subr.bf16.mxu0 0
    %96 = vmatpush1.bf16.msra.mxu0 0
    %97 = vmatprep.subr.bf16.mxu0 0
    %98 = vmatpush1.bf16.msra.mxu0 0
    %99 = vmatprep.subr.bf16.mxu0 0
    %100 = vmatpush1.bf16.msra.mxu0 0
    %101 = vmatprep.subr.bf16.mxu0 0
    %102 = vmatpush1.bf16.msra.mxu0 0
    %103 = vmatprep.subr.bf16.mxu0 0
    %104 = vmatpush1.bf16.msra.mxu0 0
    %105 = vmatprep.mubr.bf16.mxu0 0
    %106 = vmatmul.mubr.bf16.gmra.mrb[0].mxu0 %v67
    %v107 = vpop.f32.mrb[0].mxu0
    %v108 = vadd.f32 %v63, %v107
    %v109 = vpop.f32.mrb[0].mxu0
    %v110 = vpop.f32.mrb[0].mxu0
    %v111 = vpop.f32.mrb[0].mxu0
    %112 = vdwg.mxu0
    %v113 = vmax.f32 %v108, 0.0
    %v114 = vpack.c.bf16 %v113, %v113
    %v115 = vld [vmem:[#allocation5] sm:$0xff]
    %v116 = vld [vmem:[#allocation5 + $0x8] sm:$0xff]
    %v117 = vld [vmem:[#allocation5 + $0x10] sm:$0xff]
    %v118 = vld [vmem:[#allocation5 + $0x18] sm:$0xff]
    %v119 = vld [vmem:[#allocation5 + $0x20] sm:$0xff]
    %v120 = vld [vmem:[#allocation5 + $0x28] sm:$0xff]
    %v121 = vld [vmem:[#allocation5 + $0x30] sm:$0xff]
    %v122 = vld [vmem:[#allocation5 + $0x38] sm:$0xff]
    %v123 = vld [vmem:[#allocation5 + $0x40] sm:$0xff]
    %v124 = vld [vmem:[#allocation5 + $0x48] sm:$0xff]
    %v125 = vld [vmem:[#allocation5 + $0x50] sm:$0xff]
    %v126 = vld [vmem:[#allocation5 + $0x58] sm:$0xff]
    %v127 = vld [vmem:[#allocation5 + $0x60] sm:$0xff]
    %v128 = vld [vmem:[#allocation5 + $0x68] sm:$0xff]
    %v129 = vld [vmem:[#allocation5 + $0x70] sm:$0xff]
    %v130 = vld [vmem:[#allocation5 + $0x78] sm:$0xff]
    %v131 = vld [vmem:[#allocation5 + $0x80] sm:$0xff]
    %v132 = vld [vmem:[#allocation5 + $0x88] sm:$0xff]
    %v133 = vld [vmem:[#allocation5 + $0x90] sm:$0xff]
    %v134 = vld [vmem:[#allocation5 + $0x98] sm:$0xff]
    %v135 = vld [vmem:[#allocation5 + $0xa0] sm:$0xff]
    %v136 = vld [vmem:[#allocation5 + $0xa8] sm:$0xff]
    %v137 = vld [vmem:[#allocation5 + $0xb0] sm:$0xff]
    %v138 = vld [vmem:[#allocation5 + $0xb8] sm:$0xff]
    %v139 = vld [vmem:[#allocation5 + $0xc0] sm:$0xff]
    %v140 = vld [vmem:[#allocation5 + $0xc8] sm:$0xff]
    %v141 = vld [vmem:[#allocation5 + $0xd0] sm:$0xff]
    %v142 = vld [vmem:[#allocation5 + $0xd8] sm:$0xff]
    %v143 = vld [vmem:[#allocation5 + $0xe0] sm:$0xff]
    %v144 = vld [vmem:[#allocation5 + $0xe8] sm:$0xff]
    %v145 = vld [vmem:[#allocation5 + $0xf0] sm:$0xff]
    %v146 = vld [vmem:[#allocation5 + $0xf8] sm:$0xff]
    %v147 = vld [vmem:[%s4] sm:$0xf]
    %v149 = vlaneseq
    %v150 = vshrl.u32 %v149, 7
    %v151 = vsub.s32 0, %v150
    %v152 = vrot.slane %v147, %v151
    %v153 = vlaneseq
    %v154 = vshrl.u32 %v153, 7
    %v155 = vsub.s32 1, %v154
    %v156 = vrot.slane %v147, %v155
    %v157 = vlaneseq
    %v158 = vshrl.u32 %v157, 7
    %v159 = vsub.s32 2, %v158
    %v160 = vrot.slane %v147, %v159
    %v161 = vlaneseq
    %v162 = vshrl.u32 %v161, 7
    %v163 = vsub.s32 3, %v162
    %v164 = vrot.slane %v147, %v163
    %v201 = vunpack.c.l.b16 %v115
    %v202 = vunpack.c.h.b16 %v115
    %v203 = vunpack.c.l.b16 %v116
    %v204 = vunpack.c.h.b16 %v116
    %v205 = vunpack.c.l.b16 %v117
    %v206 = vunpack.c.h.b16 %v117
    %v207 = vunpack.c.l.b16 %v118
    %v208 = vunpack.c.h.b16 %v118
    %v209 = vunpack.c.l.b16 %v119
    %v210 = vunpack.c.h.b16 %v119
    %v211 = vunpack.c.l.b16 %v120
    %v212 = vunpack.c.h.b16 %v120
    %v213 = vunpack.c.l.b16 %v121
    %v214 = vunpack.c.h.b16 %v121
    %v215 = vunpack.c.l.b16 %v122
    %v216 = vunpack.c.h.b16 %v122
    %v217 = vunpack.c.l.b16 %v123
    %v218 = vunpack.c.h.b16 %v123
    %v219 = vunpack.c.l.b16 %v124
    %v220 = vunpack.c.h.b16 %v124
    %v221 = vunpack.c.l.b16 %v125
    %v222 = vunpack.c.h.b16 %v125
    %v223 = vunpack.c.l.b16 %v126
    %v224 = vunpack.c.h.b16 %v126
    %v225 = vunpack.c.l.b16 %v127
    %v226 = vunpack.c.h.b16 %v127
    %v227 = vunpack.c.l.b16 %v128
    %v228 = vunpack.c.h.b16 %v128
    %v229 = vunpack.c.l.b16 %v129
    %v230 = vunpack.c.h.b16 %v129
    %v231 = vunpack.c.l.b16 %v130
    %v232 = vunpack.c.h.b16 %v130
    %v233 = vunpack.c.l.b16 %v131
    %v234 = vunpack.c.h.b16 %v131
    %v235 = vunpack.c.l.b16 %v132
    %v236 = vunpack.c.h.b16 %v132
    %v237 = vunpack.c.l.b16 %v133
    %v238 = vunpack.c.h.b16 %v133
    %v239 = vunpack.c.l.b16 %v134
    %v240 = vunpack.c.h.b16 %v134
    %v241 = vunpack.c.l.b16 %v135
    %v242 = vunpack.c.h.b16 %v135
    %v243 = vunpack.c.l.b16 %v136
    %v244 = vunpack.c.h.b16 %v136
    %v245 = vunpack.c.l.b16 %v137
    %v246 = vunpack.c.h.b16 %v137
    %v247 = vunpack.c.l.b16 %v138
    %v248 = vunpack.c.h.b16 %v138
    %v249 = vunpack.c.l.b16 %v139
    %v250 = vunpack.c.h.b16 %v139
    %v251 = vunpack.c.l.b16 %v140
    %v252 = vunpack.c.h.b16 %v140
    %v253 = vunpack.c.l.b16 %v141
    %v254 = vunpack.c.h.b16 %v141
    %v255 = vunpack.c.l.b16 %v142
    %v256 = vunpack.c.h.b16 %v142
    %v257 = vunpack.c.l.b16 %v143
    %v258 = vunpack.c.h.b16 %v143
    %v259 = vunpack.c.l.b16 %v144
    %v260 = vunpack.c.h.b16 %v144
    %v261 = vunpack.c.l.b16 %v145
    %v262 = vunpack.c.h.b16 %v145
    %v263 = vunpack.c.l.b16 %v146
    %v264 = vunpack.c.h.b16 %v146
    %v265 = vpack.c.b16 %v205, %v201
    %v266 = vpack.c.b16 %v206, %v202
    %v267 = vpack.c.b16 %v207, %v203
    %v268 = vpack.c.b16 %v208, %v204
    %v269 = vpack.c.b16 %v213, %v209
    %v270 = vpack.c.b16 %v214, %v210
    %v271 = vpack.c.b16 %v215, %v211
    %v272 = vpack.c.b16 %v216, %v212
    %v273 = vpack.c.b16 %v221, %v217
    %v274 = vpack.c.b16 %v222, %v218
    %v275 = vpack.c.b16 %v223, %v219
    %v276 = vpack.c.b16 %v224, %v220
    %v277 = vpack.c.b16 %v229, %v225
    %v278 = vpack.c.b16 %v230, %v226
    %v279 = vpack.c.b16 %v231, %v227
    %v280 = vpack.c.b16 %v232, %v228
    %v281 = vpack.c.b16 %v237, %v233
    %v282 = vpack.c.b16 %v238, %v234
    %v283 = vpack.c.b16 %v239, %v235
    %v284 = vpack.c.b16 %v240, %v236
    %v285 = vpack.c.b16 %v245, %v241
    %v286 = vpack.c.b16 %v246, %v242
    %v287 = vpack.c.b16 %v247, %v243
    %v288 = vpack.c.b16 %v248, %v244
    %v289 = vpack.c.b16 %v253, %v249
    %v290 = vpack.c.b16 %v254, %v250
    %v291 = vpack.c.b16 %v255, %v251
    %v292 = vpack.c.b16 %v256, %v252
    %v293 = vpack.c.b16 %v261, %v257
    %v294 = vpack.c.b16 %v262, %v258
    %v295 = vpack.c.b16 %v263, %v259
    %v296 = vpack.c.b16 %v264, %v260
    %329 = vmatprep.subr.bf16.mxu0 %v266
    %330 = vmatpush1.bf16.msra.mxu0 %v265
    %331 = vmatprep.subr.bf16.mxu0 %v270
    %332 = vmatpush1.bf16.msra.mxu0 %v269
    %333 = vmatprep.subr.bf16.mxu0 %v274
    %334 = vmatpush1.bf16.msra.mxu0 %v273
    %335 = vmatprep.subr.bf16.mxu0 %v278
    %336 = vmatpush1.bf16.msra.mxu0 %v277
    %337 = vmatprep.subr.bf16.mxu0 %v282
    %338 = vmatpush1.bf16.msra.mxu0 %v281
    %339 = vmatprep.subr.bf16.mxu0 %v286
    %340 = vmatpush1.bf16.msra.mxu0 %v285
    %341 = vmatprep.subr.bf16.mxu0 %v290
    %342 = vmatpush1.bf16.msra.mxu0 %v289
    %343 = vmatprep.subr.bf16.mxu0 %v294
    %344 = vmatpush1.bf16.msra.mxu0 %v293
    %345 = vmatprep.subr.bf16.mxu0 0
    %346 = vmatpush1.bf16.msra.mxu0 0
    %347 = vmatprep.subr.bf16.mxu0 0
    %348 = vmatpush1.bf16.msra.mxu0 0
    %349 = vmatprep.subr.bf16.mxu0 0
    %350 = vmatpush1.bf16.msra.mxu0 0
    %351 = vmatprep.subr.bf16.mxu0 0
    %352 = vmatpush1.bf16.msra.mxu0 0
    %353 = vmatprep.subr.bf16.mxu0 0
    %354 = vmatpush1.bf16.msra.mxu0 0
    %355 = vmatprep.subr.bf16.mxu0 0
    %356 = vmatpush1.bf16.msra.mxu0 0
    %357 = vmatprep.subr.bf16.mxu0 0
    %358 = vmatpush1.bf16.msra.mxu0 0
    %359 = vmatprep.subr.bf16.mxu0 0
    %360 = vmatpush1.bf16.msra.mxu0 0
    %361 = vmatprep.mubr.bf16.mxu0 0
    %362 = vmatmul.mubr.bf16.gmra.mrb[0].mxu0 %v114
    %v363 = vpop.f32.mrb[0].mxu0
    %v364 = vadd.f32 %v152, %v363
    %v365 = vpop.f32.mrb[0].mxu0
    %v366 = vadd.f32 %v156, %v365
    %v367 = vpop.f32.mrb[0].mxu0
    %v368 = vpop.f32.mrb[0].mxu0
    %369 = vdwg.mxu0
    %370 = vmatprep.subr.bf16.mxu0 %v268
    %371 = vmatpush1.bf16.msra.mxu0 %v267
    %372 = vmatprep.subr.bf16.mxu0 %v272
    %373 = vmatpush1.bf16.msra.mxu0 %v271
    %374 = vmatprep.subr.bf16.mxu0 %v276
    %375 = vmatpush1.bf16.msra.mxu0 %v275
    %376 = vmatprep.subr.bf16.mxu0 %v280
    %377 = vmatpush1.bf16.msra.mxu0 %v279
    %378 = vmatprep.subr.bf16.mxu0 %v284
    %379 = vmatpush1.bf16.msra.mxu0 %v283
    %380 = vmatprep.subr.bf16.mxu0 %v288
    %381 = vmatpush1.bf16.msra.mxu0 %v287
    %382 = vmatprep.subr.bf16.mxu0 %v292
    %383 = vmatpush1.bf16.msra.mxu0 %v291
    %384 = vmatprep.subr.bf16.mxu0 %v296
    %385 = vmatpush1.bf16.msra.mxu0 %v295
    %386 = vmatprep.subr.bf16.mxu0 0
    %387 = vmatpush1.bf16.msra.mxu0 0
    %388 = vmatprep.subr.bf16.mxu0 0
    %389 = vmatpush1.bf16.msra.mxu0 0
    %390 = vmatprep.subr.bf16.mxu0 0
    %391 = vmatpush1.bf16.msra.mxu0 0
    %392 = vmatprep.subr.bf16.mxu0 0
    %393 = vmatpush1.bf16.msra.mxu0 0
    %394 = vmatprep.subr.bf16.mxu0 0
    %395 = vmatpush1.bf16.msra.mxu0 0
    %396 = vmatprep.subr.bf16.mxu0 0
    %397 = vmatpush1.bf16.msra.mxu0 0
    %398 = vmatprep.subr.bf16.mxu0 0
    %399 = vmatpush1.bf16.msra.mxu0 0
    %400 = vmatprep.subr.bf16.mxu0 0
    %401 = vmatpush1.bf16.msra.mxu0 0
    %402 = vmatprep.mubr.bf16.mxu0 0
    %403 = vmatmul.mubr.bf16.gmra.mrb[0].mxu0 %v114
    %v404 = vpop.f32.mrb[0].mxu0
    %v405 = vadd.f32 %v160, %v404
    %v406 = vpop.f32.mrb[0].mxu0
    %v407 = vadd.f32 %v164, %v406
    %v408 = vpop.f32.mrb[0].mxu0
    %v409 = vpop.f32.mrb[0].mxu0
    %410 = vdwg.mxu0
    %v411 = vmax.f32 %v364, 0.0
    %v412 = vmax.f32 %v366, 0.0
    %v413 = vmax.f32 %v405, 0.0
    %v414 = vmax.f32 %v407, 0.0
    %v415 = vld [vmem:[%s5] sm:$0xf]
    %v417 = vlaneseq
    %v418 = vshrl.u32 %v417, 7
    %v419 = vsub.s32 0, %v418
    %v420 = vrot.slane %v415, %v419
    %v421 = vlaneseq
    %v422 = vshrl.u32 %v421, 7
    %v423 = vsub.s32 1, %v422
    %v424 = vrot.slane %v415, %v423
    %v425 = vlaneseq
    %v426 = vshrl.u32 %v425, 7
    %v427 = vsub.s32 2, %v426
    %v428 = vrot.slane %v415, %v427
    %v429 = vlaneseq
    %v430 = vshrl.u32 %v429, 7
    %v431 = vsub.s32 3, %v430
    %v432 = vrot.slane %v415, %v431
    %v437 = vmul.f32 %v411, %v420
    %v438 = vmul.f32 %v412, %v424
    %v439 = vmul.f32 %v413, %v428
    %v440 = vmul.f32 %v414, %v432
    %v441 = vsel %vm69, %v437, 0.0
    %v442 = vsel %vm69, %v438, 0.0
    %v443 = vadd.f32 %v441, %v442
    %v444 = vsel %vm69, %v439, 0.0
    %v445 = vadd.f32 %v443, %v444
    %v446 = vsel %vm69, %v440, 0.0
    %v447 = vadd.f32 %v445, %v446
    %448 = vadd.xlane.f32.xlu0 %v447
    %v449 = vpop.xlane.xlu0 %448
    %v450 = vld [vmem:[#allocation2] sm:$0x1]
    %v452 = vlaneseq
    %v453 = vshrl.u32 %v452, 7
    %v454 = vsub.s32 0, %v453
    %v455 = vrot.slane %v450, %v454
    %v457 = vadd.f32 %v449, %v455
    %vm458 = vcmask 3072
    %459 = vst.msk [vmem:[%s7] sm:$0xf] %vm458, %v457
    // Predicated region
    $region38: #{critic_forward.1} parent=1 // pred_check
      _
    $region39: #{critic_forward.1} parent=1 // pred_check_branch
      %461 = sbr.rel (0) target = $region41
    $region40: #{critic_forward.1} parent=1 // pred_region
      _
    $region41: #{critic_forward.1} parent=1 // pred_fallthru
      _
    // Predicated region
    $region42: #{critic_forward.1} parent=1 // pred_check
      _
    $region43: #{critic_forward.1} parent=1 // pred_check_branch
      %463 = sbr.rel (0) target = $region45
    $region44: #{critic_forward.1} parent=1 // pred_region
      _
    $region45: #{critic_forward.1} parent=1 // pred_fallthru
      _
    %464 = vsyncpa [#allocation4], 1
    %465 = vsyncpa [#allocation6], 1

</llo_original>
